<compile_context>
chip_gen: v7x
topology: tpu7x:2x2x1
jax: 0.10.0
libtpu: 0.0.40
codegen_flags: <defaults>
</compile_context>

<pallas_src>
import functools

import jax
import jax.numpy as jnp
from jax.experimental import pallas as pl
from jax.experimental.pallas import tpu as pltpu


LANES = 128        # lane width (minor dim of a vreg)
SUBLANES = 8       # sublanes of an f32 vreg
SLAB_ROWS = 1024   # rows per inner compute slab (512 KiB f32 per input)


def _round_up(x: int, m: int) -> int:
    return ((x + m - 1) // m) * m


def _chip_config():
    """Best-effort (max_tm_rows, vmem_limit_bytes, num_core_chunks) per chip."""
    kind = ""
    try:
        kind = jax.devices()[0].device_kind.lower()
    except Exception:  # pragma: no cover - detection is best-effort only
        pass
    if "v7" in kind:
        # 2 TCs/chip, 64 MiB physical VMEM per TC: 16 MiB of input buffers + slabs.
        return 8192, 40 << 20, 2
    if "v6" in kind:
        # Single TC, 128 MiB physical VMEM.
        return 8192, 64 << 20, 1
    if "v5e" in kind or "v5 lite" in kind or "v5lite" in kind:
        # Single TC; default scoped VMEM is only 16 MiB, so raise it.
        return 4096, 48 << 20, 1
    # v4 / v5p (megacore) / unknown: conservative tile, keep the 2-way split.
    return 4096, None, 2


def _sse_kernel(p_ref, a_ref, o_ref, *, rows, tm, slab, tiles_per_core, needs_mask):
    """Accumulate sum((a - p)^2) into a per-core-chunk (8, 128) partial block."""
    c = pl.program_id(0)   # core-chunk index  ('parallel')
    i = pl.program_id(1)   # row-tile index    ('arbitrary' reduction axis)
    # NOTE: the accumulator init below relies on the reduction axis `i` being
    # the innermost grid axis (c-major iteration order) — keep grid=(c, i).

    @pl.when(i == 0)
    def _():
        o_ref[...] = jnp.zeros_like(o_ref)

    tile = c * tiles_per_core + i
    n_slabs = tm // slab

    def partial_sum(masked):
        def body(s, acc):
            r0 = pl.multiple_of(s * slab, slab)
            # |x|^2 == x^2 for real inputs.
            d = (a_ref[pl.ds(r0, slab), :].astype(jnp.float32)
                 - p_ref[pl.ds(r0, slab), :].astype(jnp.float32))
            if masked:
                # Mask BEFORE squaring: rows past `rows` come from the
                # undefined OOB region of the DMA'd block window (or from a
                # phantom tile whose DMA index was clamped); the select
                # discards any NaN/Inf garbage before it can poison the sum.
                row_ids = (tile * tm + r0
                           + jax.lax.broadcasted_iota(jnp.int32, (slab, LANES), 0))
                d = jnp.where(row_ids < rows, d, 0.0)
            sq = d * d
            # Deferred reduction: fold sublane groups with pure VPU adds into a
            # vreg-shaped accumulator (no per-slab cross-lane XLU reduce).
            return acc + sq.reshape(slab // SUBLANES, SUBLANES, LANES).sum(axis=0)

        return jax.lax.fori_loop(
            0, n_slabs, body,
            jnp.zeros((SUBLANES, LANES), jnp.float32),
            unroll=True)

    if needs_mask:
        # Only the last real tile (partial) and phantom tiles need masking;
        # interior tiles take the unmasked fast path.
        tile_is_edge = (tile + 1) * tm > rows

        @pl.when(jnp.logical_not(tile_is_edge))
        def _():
            o_ref[...] += partial_sum(masked=False)

        @pl.when(tile_is_edge)
        def _():
            o_ref[...] += partial_sum(masked=True)
    else:
        o_ref[...] += partial_sum(masked=False)


def ddqn_loss(predicted: jax.Array, actual: jax.Array) -> jax.Array:
    """Sum of squared errors, computed with a Pallas TPU reduction kernel."""
    assert predicted.shape == actual.shape, "shapes must match"

    p = predicted.reshape(-1)
    a = actual.reshape(-1)
    n = p.shape[0]

    # 128-aligned prefix goes through the kernel; the sub-128 tail is plain JAX.
    n_bulk = (n // LANES) * LANES
    rows = n_bulk // LANES

    if n_bulk < n:
        dt = a[n_bulk:].astype(jnp.float32) - p[n_bulk:].astype(jnp.float32)
        tail = jnp.sum(dt * dt)
    else:
        tail = jnp.float32(0.0)

    if rows == 0:
        # Input smaller than one 128-lane row: nothing for the kernel to do.
        return tail

    p2 = p[:n_bulk].reshape(rows, LANES)    # no-copy reshape when n % 128 == 0
    a2 = a[:n_bulk].reshape(rows, LANES)

    max_tm, vmem_limit, num_core_chunks = _chip_config()

    # slab divides tm, both multiples of 8; tm may exceed rows for tiny inputs
    # (the overhang is masked in-kernel, never padded/copied in HBM).
    slab = min(SLAB_ROWS, _round_up(rows, SUBLANES))
    tm = min(max_tm, _round_up(rows, slab))
    n_tiles = pl.cdiv(rows, tm)
    tiles_per_core = pl.cdiv(n_tiles, num_core_chunks)
    grid = (num_core_chunks, tiles_per_core)

    # Mask only needed if the last tile is partial or a chunk has a phantom tile.
    needs_mask = (rows % tm != 0) or (num_core_chunks * tiles_per_core != n_tiles)

    def in_index(c, i):
        # Clamp so a phantom tile's DMA stays in bounds (its data is masked).
        return (jnp.minimum(c * tiles_per_core + i, n_tiles - 1), 0)

    kernel = functools.partial(
        _sse_kernel,
        rows=rows,
        tm=tm,
        slab=slab,
        tiles_per_core=tiles_per_core,
        needs_mask=needs_mask,
    )

    itemsize = jnp.dtype(p2.dtype).itemsize
    cost = pl.CostEstimate(
        flops=3 * n_bulk,                 # sub + mul + add per element
        transcendentals=0,
        bytes_accessed=2 * n_bulk * itemsize
        + num_core_chunks * SUBLANES * LANES * 4,
    )

    partials = pl.pallas_call(
        kernel,
        out_shape=jax.ShapeDtypeStruct(
            (num_core_chunks * SUBLANES, LANES), jnp.float32),
        grid_spec=pltpu.PrefetchScalarGridSpec(
            num_scalar_prefetch=0,
            grid=grid,
            in_specs=[
                pl.BlockSpec((tm, LANES), in_index),
                pl.BlockSpec((tm, LANES), in_index),
            ],
            out_specs=pl.BlockSpec((SUBLANES, LANES), lambda c, i: (c, 0)),
        ),
        compiler_params=pltpu.CompilerParams(
            dimension_semantics=("parallel", "arbitrary"),
            vmem_limit_bytes=vmem_limit,
        ),
        cost_estimate=cost,
    )(p2, a2)

    # One cross-lane reduction at the very end (tiny, done by XLA).
    return jnp.sum(partials) + tail


if __name__ == "__main__":
    key = jax.random.PRNGKey(0)
    loss_fn = jax.jit(ddqn_loss)

    # Small Q-value-like inputs: (batch=2, channels=4, spatial=16, 16).
    k1, k2 = jax.random.split(key)
    shape = (2, 4, 16, 16)
    predicted = jax.random.normal(k1, shape, dtype=jnp.float32)
    actual = jax.random.normal(k2, shape, dtype=jnp.float32)

    loss = jax.block_until_ready(loss_fn(predicted, actual))
    ref = jnp.sum(jnp.abs(actual - predicted) ** 2)
    assert jnp.allclose(loss, ref, rtol=1e-5, atol=1e-5), (loss, ref)

    # Non-128-aligned shape: exercises the tail path and the masked edge tile.
    k3, k4 = jax.random.split(k2)
    shape2 = (2, 600)
    predicted2 = jax.random.normal(k3, shape2, dtype=jnp.float32)
    actual2 = jax.random.normal(k4, shape2, dtype=jnp.float32)

    loss2 = jax.block_until_ready(loss_fn(predicted2, actual2))
    ref2 = jnp.sum(jnp.abs(actual2 - predicted2) ** 2)
    assert jnp.allclose(loss2, ref2, rtol=1e-5, atol=1e-5), (loss2, ref2)

    print("KERNEL_OK")
</pallas_src>

<mosaic_0001>
module attributes {stable_mosaic.version = 11 : i64} {
  func.func @_sse_kernel(%arg0: i32, %arg1: i32, %arg2: memref<16x128xf32, #tpu.memory_space<vmem>>, %arg3: memref<16x128xf32, #tpu.memory_space<vmem>>, %arg4: memref<8x128xf32, #tpu.memory_space<vmem>>) attributes {dimension_semantics = [#tpu.dimension_semantics<parallel>, #tpu.dimension_semantics<arbitrary>], iteration_bounds = array<i64: 2, 1>, scalar_prefetch = 0 : i64, scratch_operands = 0 : i64, tpu.core_type = #tpu.core_type<tc>, window_params = [{transform_indices = @transform_0, window_bounds = array<i64: 16, 128>}, {transform_indices = @transform_1, window_bounds = array<i64: 16, 128>}, {transform_indices = @transform_2, window_bounds = array<i64: 8, 128>}]} {
    %c0_i32 = arith.constant 0 : i32
    %0 = arith.cmpi eq, %arg1, %c0_i32 : i32
    %1 = arith.extui %0 : i1 to i32
    %c0_i32_0 = arith.constant 0 : i32
    %2 = arith.cmpi ne, %1, %c0_i32_0 : i32
    scf.if %2 {
      %cst = arith.constant 0.000000e+00 : f32
      %13 = vector.broadcast %cst : f32 to vector<8x128xf32>
      %c0 = arith.constant 0 : index
      %c0_5 = arith.constant 0 : index
      %14 = vector.load %arg4[%c0, %c0_5] : memref<8x128xf32, #tpu.memory_space<vmem>>, vector<8x128xf32>
      tpu.vector_store %arg4[%c0, %c0_5], %13 {strides = array<i32>} : memref<8x128xf32, #tpu.memory_space<vmem>>, vector<8x128xf32>,
    } else {
    }
    %c1_i32 = arith.constant 1 : i32
    %3 = arith.muli %arg0, %c1_i32 : i32
    %4 = arith.addi %3, %arg1 : i32
    %c1_i32_1 = arith.constant 1 : i32
    %5 = arith.addi %4, %c1_i32_1 : i32
    %c16_i32 = arith.constant 16 : i32
    %6 = arith.muli %5, %c16_i32 : i32
    %c16_i32_2 = arith.constant 16 : i32
    %7 = arith.cmpi sgt, %6, %c16_i32_2 : i32
    %true = arith.constant true
    %8 = arith.xori %7, %true : i1
    %9 = arith.extui %8 : i1 to i32
    %c0_i32_3 = arith.constant 0 : i32
    %10 = arith.cmpi ne, %9, %c0_i32_3 : i32
    scf.if %10 {
      %c0 = arith.constant 0 : index
      %c0_5 = arith.constant 0 : index
      %13 = vector.load %arg4[%c0, %c0_5] : memref<8x128xf32, #tpu.memory_space<vmem>>, vector<8x128xf32>
      %cst = arith.constant 0.000000e+00 : f32
      %14 = vector.broadcast %cst : f32 to vector<8x128xf32>
      %c0_i32_6 = arith.constant 0 : i32
      %c16_i32_7 = arith.constant 16 : i32
      %15 = arith.muli %c0_i32_6, %c16_i32_7 : i32
      %16 = tpu.assume_multiple %15, 16 : i32
      %17 = arith.index_cast %16 : i32 to index
      %c0_8 = arith.constant 0 : index
      %18 = vector.load %arg3[%17, %c0_8] : memref<16x128xf32, #tpu.memory_space<vmem>>, vector<16x128xf32>
      %19 = arith.index_cast %16 : i32 to index
      %c0_9 = arith.constant 0 : index
      %20 = vector.load %arg2[%19, %c0_9] : memref<16x128xf32, #tpu.memory_space<vmem>>, vector<16x128xf32>
      %21 = arith.subf %18, %20 : vector<16x128xf32>
      %22 = arith.mulf %21, %21 : vector<16x128xf32>
      %23 = vector.shape_cast %22 : vector<16x128xf32> to vector<2x8x128xf32>
      %cst_10 = arith.constant dense<0.000000e+00> : vector<8x128xf32>
      %24 = vector.multi_reduction <add>, %23, %cst_10 [0] : vector<2x8x128xf32> to vector<8x128xf32>
      %25 = arith.addf %14, %24 : vector<8x128xf32>
      %c1_i32_11 = arith.constant 1 : i32
      %26 = arith.addf %13, %25 : vector<8x128xf32>
      %c0_12 = arith.constant 0 : index
      %c0_13 = arith.constant 0 : index
      %27 = vector.load %arg4[%c0_12, %c0_13] : memref<8x128xf32, #tpu.memory_space<vmem>>, vector<8x128xf32>
      tpu.vector_store %arg4[%c0_12, %c0_13], %26 {strides = array<i32>} : memref<8x128xf32, #tpu.memory_space<vmem>>, vector<8x128xf32>,
    } else {
    }
    %11 = arith.extui %7 : i1 to i32
    %c0_i32_4 = arith.constant 0 : i32
    %12 = arith.cmpi ne, %11, %c0_i32_4 : i32
    scf.if %12 {
      %c0 = arith.constant 0 : index
      %c0_5 = arith.constant 0 : index
      %13 = vector.load %arg4[%c0, %c0_5] : memref<8x128xf32, #tpu.memory_space<vmem>>, vector<8x128xf32>
      %cst = arith.constant 0.000000e+00 : f32
      %14 = vector.broadcast %cst : f32 to vector<8x128xf32>
      %c0_i32_6 = arith.constant 0 : i32
      %c16_i32_7 = arith.constant 16 : i32
      %15 = arith.muli %c0_i32_6, %c16_i32_7 : i32
      %16 = tpu.assume_multiple %15, 16 : i32
      %17 = arith.index_cast %16 : i32 to index
      %c0_8 = arith.constant 0 : index
      %18 = vector.load %arg3[%17, %c0_8] : memref<16x128xf32, #tpu.memory_space<vmem>>, vector<16x128xf32>
      %19 = arith.index_cast %16 : i32 to index
      %c0_9 = arith.constant 0 : index
      %20 = vector.load %arg2[%19, %c0_9] : memref<16x128xf32, #tpu.memory_space<vmem>>, vector<16x128xf32>
      %21 = arith.subf %18, %20 : vector<16x128xf32>
      %c16_i32_10 = arith.constant 16 : i32
      %22 = arith.muli %4, %c16_i32_10 : i32
      %23 = arith.addi %22, %16 : i32
      %24 = tpu.iota {dimensions = array<i32: 0>} : vector<16x128xi32>
      %25 = vector.broadcast %23 : i32 to vector<16x128xi32>
      %26 = arith.addi %25, %24 : vector<16x128xi32>
      %c16_i32_11 = arith.constant 16 : i32
      %27 = vector.broadcast %c16_i32_11 : i32 to vector<16x128xi32>
      %28 = arith.cmpi slt, %26, %27 : vector<16x128xi32>
      %cst_12 = arith.constant 0.000000e+00 : f32
      %29 = vector.broadcast %cst_12 : f32 to vector<16x128xf32>
      %30 = arith.select %28, %21, %29 : vector<16x128xi1>, vector<16x128xf32>
      %31 = arith.mulf %30, %30 : vector<16x128xf32>
      %32 = vector.shape_cast %31 : vector<16x128xf32> to vector<2x8x128xf32>
      %cst_13 = arith.constant dense<0.000000e+00> : vector<8x128xf32>
      %33 = vector.multi_reduction <add>, %32, %cst_13 [0] : vector<2x8x128xf32> to vector<8x128xf32>
      %34 = arith.addf %14, %33 : vector<8x128xf32>
      %c1_i32_14 = arith.constant 1 : i32
      %35 = arith.addf %13, %34 : vector<8x128xf32>
      %c0_15 = arith.constant 0 : index
      %c0_16 = arith.constant 0 : index
      %36 = vector.load %arg4[%c0_15, %c0_16] : memref<8x128xf32, #tpu.memory_space<vmem>>, vector<8x128xf32>
      tpu.vector_store %arg4[%c0_15, %c0_16], %35 {strides = array<i32>} : memref<8x128xf32, #tpu.memory_space<vmem>>, vector<8x128xf32>,
    } else {
    }
    return
  }
  func.func @transform_0(%arg0: i32, %arg1: i32) -> (i32, i32) {
    %c1_i32 = arith.constant 1 : i32
    %0 = arith.muli %arg0, %c1_i32 : i32
    %1 = arith.addi %0, %arg1 : i32
    %c0_i32 = arith.constant 0 : i32
    %2 = arith.minsi %1, %c0_i32 : i32
    %c0_i32_0 = arith.constant 0 : i32
    %c0_i32_1 = arith.constant 0 : i32
    return %2, %c0_i32_0 : i32, i32
  }
  func.func @transform_1(%arg0: i32, %arg1: i32) -> (i32, i32) {
    %c1_i32 = arith.constant 1 : i32
    %0 = arith.muli %arg0, %c1_i32 : i32
    %1 = arith.addi %0, %arg1 : i32
    %c0_i32 = arith.constant 0 : i32
    %2 = arith.minsi %1, %c0_i32 : i32
    %c0_i32_0 = arith.constant 0 : i32
    %c0_i32_1 = arith.constant 0 : i32
    return %2, %c0_i32_0 : i32, i32
  }
  func.func @transform_2(%arg0: i32, %arg1: i32) -> (i32, i32) {
    %c0_i32 = arith.constant 0 : i32
    %c0_i32_0 = arith.constant 0 : i32
    return %arg0, %c0_i32 : i32, i32
  }
}

</mosaic_0001>

<llo_original>
// kernel: ddqn_loss.1
$region0: #{ddqn_loss.1}
  #allocation0 [shape = 'u32[]', space=smem, size = 0x4, offset = 0x4, fixed_abs, tag = 'smem constant byte address 0x4 - core index']
  #allocation1 [shape = 'u32[144,128]{1,0:T(1,128)}', space=vmem, size = 0x12000, scoped, tag = 'internal scratch']
  %s0 = inlined_call_operand.vmem [shape: f32[16,128], index: 0, kind: input, shape index: {}]
  %s1 = inlined_call_operand.vmem [shape: f32[16,128], index: 1, kind: input, shape index: {}]
  %s2 = inlined_call_operand.vmem [shape: f32[16,128], index: 2, kind: output, shape index: {}]
  %s3 = sld [smem:[#allocation0]]
  $region53: #{ddqn_loss.1} parent=0
    _
  %s5 = ssub.s32 1, %s3
  %s6 = scalar_select 0, %s5, %s3
  loop: start=0, step=1, limit=4
  $region2: #{ddqn_loss.1} parent=0 // loop_pre_header
    _
  $region3: #{ddqn_loss.1} parent=0 // loop_header
    %s8 = sphi 0, %s12
    %p9 = scmp.ge.s32.totalorder %s8, 4
    %s15 = sphi 0, %s27
    %s16 = sphi 0, %s23
    %s17 = sphi 0, %s15
    %s18 = sphi 0, %s16
    %s19 = sphi 0, %s17
    %s20 = sphi 0, %s18
    %s36 = sphi 0, %s38
    %s39 = sphi 0, %s36
    %s40 = sphi 0, %s39
    %s56 = sphi 0, %s40
    %s68 = sphi 0, %s70
    %s71 = sphi 0, %s68
    %s72 = sphi 0, %s71
    %s88 = sphi 0, %s72
    %s94 = sphi 0, %s96
    %s97 = sphi 0, %s94
    %s98 = sphi 0, %s97
    %s114 = sphi 0, %s98
  $region4: #{ddqn_loss.1} parent=0 // loop_header_branch
    %11 = sbr.rel (%p9) target = $region8
  $region5: #{ddqn_loss.1} parent=0 // loop_body
    %s13 = ssub.s32 %s8, 1
    %s14 = ssub.s32 %s8, 2
    %s21 = sadd.s32 1, %s16
    %p22 = scmp.ge.s32.totalorder %s21, 1
    %s23 = scalar_select %p22, 0, %s21
    %s24 = sadd.s32 1, %s15
    %s25 = scalar_select %p22, %s24, %s15
    %p26 = scmp.ge.s32.totalorder %s25, 2
    %s27 = scalar_select %p26, 0, %s25
    %s28 = sadd.s32 %s15, %s16
    %p29 = scmp.lt.s32.totalorder %s28, 0
    %s30 = scalar_select %p29, %s28, 0
    %s31 = sadd.s32 %s27, %s23
    %p32 = scmp.lt.s32.totalorder %s31, 0
    %s33 = scalar_select %p32, %s31, 0
    %s34 = ssub.s32 %s30, %s33
    %p35 = scmp.eq.s32.totalorder %s34, 0
    %s37 = sadd.s32 %s36, 1
    %s38 = scalar_select %p35, %s36, %s37
    %p41 = pneg %p35
    %p42 = scmp.eq.s32.totalorder %s8, 1
    %p43 = por %p41, %p42
    %p44 = scmp.ne.s32.totalorder %s36, %s39
    %p45 = scmp.eq.s32.totalorder %s8, 0
    %p46 = por %p44, %p45
    %p47 = scmp.ne.s32.totalorder %s36, %s39
    %p48 = scmp.eq.s32.totalorder %s13, 1
    %p49 = por %p47, %p48
    %p50 = scmp.ne.s32.totalorder %s39, %s40
    %p51 = scmp.eq.s32.totalorder %s13, 0
    %p52 = por %p50, %p51
    %p53 = scmp.ne.s32.totalorder %s39, %s40
    %p54 = scmp.eq.s32.totalorder %s14, 1
    %p55 = por %p53, %p54
    %p57 = scmp.ne.s32.totalorder %s40, %s56
    %p58 = scmp.eq.s32.totalorder %s14, 0
    %p59 = por %p57, %p58
    %s60 = sadd.s32 %s15, %s16
    %p61 = scmp.lt.s32.totalorder %s60, 0
    %s62 = scalar_select %p61, %s60, 0
    %s63 = sadd.s32 %s27, %s23
    %p64 = scmp.lt.s32.totalorder %s63, 0
    %s65 = scalar_select %p64, %s63, 0
    %s66 = ssub.s32 %s62, %s65
    %p67 = scmp.eq.s32.totalorder %s66, 0
    %s69 = sadd.s32 %s68, 1
    %s70 = scalar_select %p67, %s68, %s69
    %p73 = pneg %p67
    %p74 = scmp.eq.s32.totalorder %s8, 1
    %p75 = por %p73, %p74
    %p76 = scmp.ne.s32.totalorder %s68, %s71
    %p77 = scmp.eq.s32.totalorder %s8, 0
    %p78 = por %p76, %p77
    %p79 = scmp.ne.s32.totalorder %s68, %s71
    %p80 = scmp.eq.s32.totalorder %s13, 1
    %p81 = por %p79, %p80
    %p82 = scmp.ne.s32.totalorder %s71, %s72
    %p83 = scmp.eq.s32.totalorder %s13, 0
    %p84 = por %p82, %p83
    %p85 = scmp.ne.s32.totalorder %s71, %s72
    %p86 = scmp.eq.s32.totalorder %s14, 1
    %p87 = por %p85, %p86
    %p89 = scmp.ne.s32.totalorder %s72, %s88
    %p90 = scmp.eq.s32.totalorder %s14, 0
    %p91 = por %p89, %p90
    %s92 = ssub.s32 %s15, %s27
    %p93 = scmp.eq.s32.totalorder %s92, 0
    %s95 = sadd.s32 %s94, 1
    %s96 = scalar_select %p93, %s94, %s95
    %p99 = pneg %p93
    %p100 = scmp.eq.s32.totalorder %s8, 1
    %p101 = por %p99, %p100
    %p102 = scmp.ne.s32.totalorder %s94, %s97
    %p103 = scmp.eq.s32.totalorder %s8, 0
    %p104 = por %p102, %p103
    %p105 = scmp.ne.s32.totalorder %s94, %s97
    %p106 = scmp.eq.s32.totalorder %s13, 1
    %p107 = por %p105, %p106
    %p108 = scmp.ne.s32.totalorder %s97, %s98
    %p109 = scmp.eq.s32.totalorder %s13, 0
    %p110 = por %p108, %p109
    %p111 = scmp.ne.s32.totalorder %s97, %s98
    %p112 = scmp.eq.s32.totalorder %s14, 1
    %p113 = por %p111, %p112
    %p115 = scmp.ne.s32.totalorder %s98, %s114
    %p116 = scmp.eq.s32.totalorder %s14, 0
    %p117 = por %p115, %p116
    %p118 = scmp.le.s32.totalorder 1, %s8
    %p119 = scmp.lt.s32.totalorder %s8, 3
    %p120 = pnand %p118, %p119
    %p121 = pneg %p120
    // Predicated region
    $region9: #{ddqn_loss.1} parent=5 // pred_check
      _
    $region10: #{ddqn_loss.1} parent=5 // pred_check_branch
      %123 = sbr.rel (%p120) target = $region12
    $region11: #{ddqn_loss.1} parent=5 // pred_region
      %s124 = ssub.s32 %s8, 1
    $region12: #{ddqn_loss.1} parent=5 // pred_fallthru
      _
    %p125 = scmp.lt.s32.totalorder %s8, 2
    // Predicated region
    $region13: #{ddqn_loss.1} parent=5 // pred_check
      %p126 = pneg %p125
    $region14: #{ddqn_loss.1} parent=5 // pred_check_branch
      %128 = sbr.rel (%p126) target = $region16
    $region15: #{ddqn_loss.1} parent=5 // pred_region
      // Predicated region
      $region17: #{ddqn_loss.1} parent=15 // pred_check
        %p129 = pneg %p46
      $region18: #{ddqn_loss.1} parent=15 // pred_check_branch
        %131 = sbr.rel (%p129) target = $region20
      $region19: #{ddqn_loss.1} parent=15 // pred_region
        %s132 = sadd.s32 %s15, %s16
        %p133 = scmp.lt.s32.totalorder %s132, 0
        %s134 = scalar_select %p133, %s132, 0
        %s135 = smul.u32 2, %s134
        %p136 = scmp.lt.s32.totalorder %s135, 1
        %s137 = scalar_select %p136, %s135, 1
        %s138 = smul.addr %s137, 8
        %s139 = scalar_lea.vmem %s0, %s138
        %s140 = sadd.s32 %s15, %s16
        %p141 = scmp.lt.s32.totalorder %s140, 0
        %s142 = scalar_select %p141, %s140, 0
        %s143 = smul.u32 2, %s142
      $region20: #{ddqn_loss.1} parent=15 // pred_fallthru
        _
      // Predicated region
      $region21: #{ddqn_loss.1} parent=15 // pred_check
        %p144 = pneg %p78
      $region22: #{ddqn_loss.1} parent=15 // pred_check_branch
        %146 = sbr.rel (%p144) target = $region24
      $region23: #{ddqn_loss.1} parent=15 // pred_region
        %s147 = sadd.s32 %s15, %s16
        %p148 = scmp.lt.s32.totalorder %s147, 0
        %s149 = scalar_select %p148, %s147, 0
        %s150 = smul.u32 2, %s149
        %p151 = scmp.lt.s32.totalorder %s150, 1
        %s152 = scalar_select %p151, %s150, 1
        %s153 = smul.addr %s152, 8
        %s154 = scalar_lea.vmem %s1, %s153
        %s155 = sadd.s32 %s15, %s16
        %p156 = scmp.lt.s32.totalorder %s155, 0
        %s157 = scalar_select %p156, %s155, 0
        %s158 = smul.u32 2, %s157
      $region24: #{ddqn_loss.1} parent=15 // pred_fallthru
        _
    $region16: #{ddqn_loss.1} parent=5 // pred_fallthru
      _
    %p159 = scmp.le.s32.totalorder 1, %s8
    %p160 = scmp.lt.s32.totalorder %s8, 3
    %p161 = pnand %p159, %p160
    %p162 = pneg %p161
    // Predicated region
    $region25: #{ddqn_loss.1} parent=5 // pred_check
      _
    $region26: #{ddqn_loss.1} parent=5 // pred_check_branch
      %164 = sbr.rel (%p161) target = $region28
    $region27: #{ddqn_loss.1} parent=5 // pred_region
      %s165 = ssub.s32 %s8, 1
      %s166 = sadd.s32 %s17, %s18
      %p167 = scmp.lt.s32.totalorder %s166, 0
      %s168 = scalar_select %p167, %s166, 0
      %s169 = smul.u32 2, %s168
      %p170 = scmp.lt.s32.totalorder %s169, 1
      %s171 = scalar_select %p170, %s169, 1
      %s172 = smul.addr %s171, 8
      %s173 = scalar_lea.vmem %s0, %s172
      %p174 = pneg %p52
      %p175 = pneg %p49
      %s176 = sadd.s32 %s17, %s18
      %p177 = scmp.lt.s32.totalorder %s176, 0
      %s178 = scalar_select %p177, %s176, 0
      %s179 = smul.u32 2, %s178
      %p180 = scmp.lt.s32.totalorder %s179, 1
      %s181 = scalar_select %p180, %s179, 1
      %s182 = smul.addr %s181, 8
      %s183 = scalar_lea.vmem %s1, %s182
      %p184 = pneg %p84
      %p185 = pneg %p81
      %p186 = pneg %p110
      %p187 = pneg %p107
      %p188 = scmp.lt.s32.totalorder %s17, 1
      %s189 = scalar_select %p188, %s17, 1
      %s190 = smul.addr %s189, 8
      %s191 = scalar_lea.vmem %s2, %s190
      %s192 = sadd.s32 %s17, %s18
      %p193 = scmp.lt.s32.totalorder %s192, 0
      %s194 = scalar_select %p193, %s192, 0
      %s195 = smul.u32 2, %s194
      %p196 = scmp.lt.s32.totalorder %s195, 1
      %s197 = scalar_select %p196, %s195, 1
      %s198 = smul.addr %s197, 8
      %s199 = scalar_lea.vmem %s0, %s198
      %s200 = sadd.s32 %s17, %s18
      %p201 = scmp.lt.s32.totalorder %s200, 0
      %s202 = scalar_select %p201, %s200, 0
      %s203 = smul.u32 2, %s202
      %s204 = sadd.s32 %s17, %s18
      %p205 = scmp.lt.s32.totalorder %s204, 0
      %s206 = scalar_select %p205, %s204, 0
      %s207 = smul.u32 2, %s206
      %p208 = scmp.lt.s32.totalorder %s207, 1
      %s209 = scalar_select %p208, %s207, 1
      %s210 = smul.addr %s209, 8
      %s211 = scalar_lea.vmem %s1, %s210
      %s212 = sadd.s32 %s17, %s18
      %p213 = scmp.lt.s32.totalorder %s212, 0
      %s214 = scalar_select %p213, %s212, 0
      %s215 = smul.u32 2, %s214
      %p216 = scmp.lt.s32.totalorder %s17, 1
      %s217 = scalar_select %p216, %s17, 1
      %s218 = smul.addr %s217, 8
      %s219 = scalar_lea.vmem %s2, %s218
      %p220 = scmp.eq.s32.totalorder %s18, 0
      // Predicated region
      $region29: #{ddqn_loss.1} parent=27 // pred_check
        %p221 = pneg %p220
      $region30: #{ddqn_loss.1} parent=27 // pred_check_branch
        %223 = sbr.rel (%p221) target = $region32
      $region31: #{ddqn_loss.1} parent=27 // pred_region
        %224 = vst [vmem:[%s219] sm:$0xff] 0.0
      $region32: #{ddqn_loss.1} parent=27 // pred_fallthru
        _
      %s225 = sadd.s32 %s17, %s18
      %s226 = sadd.s32 %s225, 1
      %s227 = smul.u32 %s226, 16
      %p228 = scmp.gt.s32.totalorder %s227, 16
      %p229 = scmp.le.s32.totalorder %s227, 16
      // Predicated region
      $region33: #{ddqn_loss.1} parent=27 // pred_check
        %p230 = pneg %p229
      $region34: #{ddqn_loss.1} parent=27 // pred_check_branch
        %232 = sbr.rel (%p230) target = $region36
      $region35: #{ddqn_loss.1} parent=27 // pred_region
        %v233 = vld [vmem:[%s219] sm:$0xff]
        %v234 = vld [vmem:[%s211] sm:$0xff]
        %v235 = vld [vmem:[%s211 + $0x8] sm:$0xff]
        %v236 = vld [vmem:[%s199] sm:$0xff]
        %v237 = vld [vmem:[%s199 + $0x8] sm:$0xff]
        %v238 = vsub.f32 %v234, %v236
        %v239 = vsub.f32 %v235, %v237
        %v240 = vmul.f32 %v238, %v238
        %v241 = vmul.f32 %v239, %v239
        %v242 = vadd.f32 %v240, %v241
        %v243 = vadd.f32 %v242, 0.0
        %v244 = vadd.f32 %v233, %v243
        %245 = vst [vmem:[%s219] sm:$0xff] %v244
      $region36: #{ddqn_loss.1} parent=27 // pred_fallthru
        _
      // Predicated region
      $region37: #{ddqn_loss.1} parent=27 // pred_check
        %p246 = pneg %p228
      $region38: #{ddqn_loss.1} parent=27 // pred_check_branch
        %248 = sbr.rel (%p246) target = $region40
      $region39: #{ddqn_loss.1} parent=27 // pred_region
        %v249 = vld [vmem:[%s219] sm:$0xff]
        %v250 = vld [vmem:[%s211] sm:$0xff]
        %v251 = vld [vmem:[%s211 + $0x8] sm:$0xff]
        %v252 = vld [vmem:[%s199] sm:$0xff]
        %v253 = vld [vmem:[%s199 + $0x8] sm:$0xff]
        %v254 = vsub.f32 %v250, %v252
        %v255 = vsub.f32 %v251, %v253
        %s256 = smul.u32 %s225, 16
        %s257 = sadd.s32 %s256, 0
        %v258 = vlaneseq
        %v259 = vshrl.u32 %v258, 7
        %v260 = vadd.s32 %v259, 8
        %v261 = vstv %s257
        %v262 = vadd.s32 %v261, %v259
        %v263 = vadd.s32 %v261, %v260
        %vm264 = vcmp.lt.s32.totalorder %v262, 16
        %vm265 = vcmp.lt.s32.totalorder %v263, 16
        %v266 = vsel %vm264, %v254, 0.0
        %v267 = vsel %vm265, %v255, 0.0
        %v268 = vmul.f32 %v266, %v266
        %v269 = vmul.f32 %v267, %v267
        %v270 = vadd.f32 %v268, %v269
        %v271 = vadd.f32 %v270, 0.0
        %v272 = vadd.f32 %v249, %v271
        %273 = vst [vmem:[%s219] sm:$0xff] %v272
      $region40: #{ddqn_loss.1} parent=27 // pred_fallthru
        _
      %p274 = scmp.lt.s32.totalorder %s17, 1
      %s275 = scalar_select %p274, %s17, 1
      %s276 = smul.addr %s275, 8
      %s277 = scalar_lea.vmem %s2, %s276
      // Predicated region
      $region41: #{ddqn_loss.1} parent=27 // pred_check
        %p278 = pneg %p107
      $region42: #{ddqn_loss.1} parent=27 // pred_check_branch
        %280 = sbr.rel (%p278) target = $region44
      $region43: #{ddqn_loss.1} parent=27 // pred_region
        _
      $region44: #{ddqn_loss.1} parent=27 // pred_fallthru
        _
    $region28: #{ddqn_loss.1} parent=5 // pred_fallthru
      _
    %p281 = scmp.le.s32.totalorder 2, %s8
    // Predicated region
    $region45: #{ddqn_loss.1} parent=5 // pred_check
      %p282 = pneg %p281
    $region46: #{ddqn_loss.1} parent=5 // pred_check_branch
      %284 = sbr.rel (%p282) target = $region48
    $region47: #{ddqn_loss.1} parent=5 // pred_region
      %s285 = ssub.s32 %s8, 2
      // Predicated region
      $region49: #{ddqn_loss.1} parent=47 // pred_check
        %p286 = pneg %p113
      $region50: #{ddqn_loss.1} parent=47 // pred_check_branch
        %288 = sbr.rel (%p286) target = $region52
      $region51: #{ddqn_loss.1} parent=47 // pred_region
        %p289 = scmp.lt.s32.totalorder %s19, 1
        %s290 = scalar_select %p289, %s19, 1
        %s291 = smul.addr %s290, 8
        %s292 = scalar_lea.vmem %s2, %s291
      $region52: #{ddqn_loss.1} parent=47 // pred_fallthru
        _
    $region48: #{ddqn_loss.1} parent=5 // pred_fallthru
      _
  $region6: #{ddqn_loss.1} parent=0 // loop_footer
    %s12 = sadd.s32 1, %s8
  $region7: #{ddqn_loss.1} parent=0 // loop_footer_branch
    %7 = sbr.rel target = $region3
  $region8: #{ddqn_loss.1} parent=0 // loop_exit
    _

</llo_original>
